<compile_context>
chip_gen: v7x
topology: tpu7x:2x2x1
jax: 0.10.0
libtpu: 0.0.40
codegen_flags: <defaults>
</compile_context>

<pallas_src>
import math

import jax
import jax.numpy as jnp
from jax.experimental import pallas as pl
from jax.experimental.pallas import tpu as pltpu


def _round_up(v, m):
    return ((v + m - 1) // m) * m


def _fcnn_fused_kernel(x_ref, w1_ref, b1_ref, w2_ref, b2_ref, o_ref, h_acc):
    """Fused forward: sigmoid(relu(x @ W1 + b1) @ W2^T + b2).

    x_ref : (tm, tk)      current (M, K) tile of the input
    w1_ref: (tk, H)       current K-slab of fc1 weights (K-major layout)
    b1_ref: (1, H)        fc1 bias (VMEM resident)
    w2_ref: (1, H)        fc2 weight row (torch layout (out=1, in=H), resident)
    b2_ref: (1, 1)        fc2 bias (resident)
    o_ref : (1, tm)       lane-dense output slab (M-tile i of the output)
    h_acc : (tm, H) f32   VMEM accumulator for the fc1 pre-activation
    """
    k = pl.program_id(1)

    @pl.when(k == 0)
    def _init():
        h_acc[...] = jnp.zeros_like(h_acc)

    # fc1 partial matmul on the MXU, accumulated in f32.
    h_acc[...] += jnp.dot(
        x_ref[...], w1_ref[...], preferred_element_type=jnp.float32
    )

    @pl.when(k == pl.num_programs(1) - 1)
    def _epilogue():
        # bias + ReLU (VPU), all in f32.
        h = jnp.maximum(h_acc[...] + b1_ref[...], 0.0)          # (tm, H)
        # fc2 (single output unit): (1,H) contracted with (tm,H) on its last
        # dim -> (1, tm).  MXU does the "transpose", result is lane-dense.
        logits = jax.lax.dot_general(
            w2_ref[...].astype(jnp.float32), h,
            dimension_numbers=(((1,), (1,)), ((), ())),
            preferred_element_type=jnp.float32,
        ) + b2_ref[...]                                          # (1, tm)
        # sigmoid: exp + approximate reciprocal both go to the EUP slot.
        probs = pl.reciprocal(1.0 + jnp.exp(-logits), approx=True)
        o_ref[...] = probs.astype(o_ref.dtype)


def fcnn_forward(x, w1, b1, w2, b2, *, tm_max=1024):
    """sigmoid(relu(x @ w1 + b1) @ w2.T + b2) as a single pallas_call.

    Shapes: x (M, K), w1 (K, H), b1 (H,), w2 (1, H), b2 (1,).
    """
    M, K = x.shape
    Kw, H = w1.shape
    assert Kw == K and w2.shape == (1, H) and b1.shape == (H,) and b2.shape == (1,)
    itemsize = jnp.dtype(x.dtype).itemsize

    # --- VMEM budget keyed off the actual part (v7x: 64 MiB; v5e/v6e: 128). ---
    try:
        vmem_cap = int(pltpu.get_tpu_info().vmem_capacity_bytes)
    except Exception:
        vmem_cap = 64 * 1024 * 1024            # conservative (v7x) fallback
    vmem_limit = min(int(vmem_cap * 0.75), 100 * 1024 * 1024)
    tile_budget = int(vmem_limit * 0.85)       # headroom for internal scratch

    def fits(tm, tk):
        return (2 * tm * tk * itemsize         # x tile, double buffered
                + 2 * tk * H * itemsize        # w1 slab, double buffered
                + tm * H * 4                   # f32 accumulator
                + 2 * tm * itemsize            # output slab, double buffered
                + 4 * H * itemsize + 4096      # b1, w2, b2 + slack
                ) <= tile_budget

    # --- K tiling: prefer one full-K block so w1 has a constant block index
    #     and is DMA'd from HBM exactly once (fully VMEM resident). ---
    if fits(8, K) or K <= 128:
        tk = K
    else:
        tk = 512
        while tk > 128 and not fits(8, tk):
            tk //= 2
    Kp = K if tk == K else _round_up(K, tk)

    # --- M tiling: as large as the budget allows (amortizes per-step overhead
    #     and any w1 re-streaming), but >= 2 tiles for batches >= 256 so both
    #     v7x TensorCores get work on the "parallel" axis. ---
    fixed = 2 * tk * H * itemsize + 4 * H * itemsize + 4096
    per_row = 2 * tk * itemsize + H * 4 + 2 * itemsize
    tm_cap = (tile_budget - fixed) // per_row
    tm_cap = max(8, min(tm_max, (tm_cap // 8) * 8))
    if M <= tm_cap and M < 256:
        tm = M                                               # one full-extent tile
    else:
        tm = min(tm_cap, _round_up(pl.cdiv(M, 2), 8))        # >= 2 M tiles

    grid_m = pl.cdiv(M, tm)     # ragged trailing M block: no pad, rows dropped later
    grid_k = Kp // tk

    # K-axis zero-pad only when K is actually streamed (exact for the matmul).
    xp = x if Kp == K else jnp.pad(x, ((0, 0), (0, Kp - K)))
    w1p = w1 if Kp == K else jnp.pad(w1, ((0, Kp - K), (0, 0)))
    b1_2d = b1.reshape(1, H)
    b2_2d = b2.reshape(1, 1)

    w1_reads = (1 if grid_k == 1 else grid_m) * Kp * H
    cost = pl.CostEstimate(
        flops=2 * M * Kp * H + 3 * M * H,       # fc1 matmul + bias/relu + fc2
        transcendentals=2 * M,                  # exp + approx reciprocal per row
        bytes_accessed=(M * Kp + w1_reads + 2 * H + 1 + grid_m * tm) * itemsize,
    )

    out = pl.pallas_call(
        _fcnn_fused_kernel,
        out_shape=jax.ShapeDtypeStruct((grid_m, tm), x.dtype),
        grid_spec=pltpu.PrefetchScalarGridSpec(
            num_scalar_prefetch=0,
            grid=(grid_m, grid_k),
            in_specs=[
                pl.BlockSpec((tm, tk), lambda i, k: (i, k)),   # x tile
                pl.BlockSpec((tk, H), lambda i, k: (k, 0)),    # w1 slab (resident if grid_k==1)
                pl.BlockSpec((1, H), lambda i, k: (0, 0)),     # b1 (resident)
                pl.BlockSpec((1, H), lambda i, k: (0, 0)),     # w2 (resident)
                pl.BlockSpec((1, 1), lambda i, k: (0, 0)),     # b2 (resident)
            ],
            out_specs=pl.BlockSpec((1, tm), lambda i, k: (i, 0)),
            scratch_shapes=[pltpu.VMEM((tm, H), jnp.float32)],
        ),
        compiler_params=pltpu.CompilerParams(
            dimension_semantics=("parallel", "arbitrary"),
            vmem_limit_bytes=vmem_limit,
        ),
        cost_estimate=cost,
    )(xp, w1p, b1_2d, w2, b2_2d)

    # (grid_m, tm) lane-dense slab -> (M, 1); padded/garbage rows dropped here.
    return out.reshape(-1)[:M].reshape(M, 1)


class SimpleFCNN:
    """JAX/Pallas port of the PyTorch SimpleFCNN (fc1 -> ReLU -> fc2 -> Sigmoid)."""

    def __init__(self, input_size, hidden_size, key, q=False, dtype=jnp.float32):
        k1, k2, k3, k4 = jax.random.split(key, 4)
        bound1 = 1.0 / math.sqrt(input_size)
        bound2 = 1.0 / math.sqrt(hidden_size)
        # fc1 weight stored K-major (input_size, hidden) — transpose of torch's
        # (hidden, input_size) — so the kernel consumes it without transposes.
        self.w1 = jax.random.uniform(
            k1, (input_size, hidden_size), dtype, -bound1, bound1)
        self.b1 = jax.random.uniform(k2, (hidden_size,), dtype, -bound1, bound1)
        # fc2 weight kept in torch layout (out_features=1, in_features=hidden).
        self.w2 = jax.random.uniform(k3, (1, hidden_size), dtype, -bound2, bound2)
        self.b2 = jax.random.uniform(k4, (1,), dtype, -bound2, bound2)
        self.q = q
        # TODO(synk): QuantStub/DeQuantStub (q=True int8 path) has no clean
        # Pallas equivalent here; the q=False floating-point path is implemented.

    def __call__(self, x):
        return fcnn_forward(x, self.w1, self.b1, self.w2, self.b2)


if __name__ == "__main__":
    key = jax.random.PRNGKey(0)
    kx, kp = jax.random.split(key)

    batch, input_size, hidden_size = 8, 16, 32
    x = jax.random.normal(kx, (batch, input_size), dtype=jnp.float32)

    model = SimpleFCNN(input_size, hidden_size, key=kp)
    y = jax.block_until_ready(model(x))
    assert y.shape == (batch, 1) and y.dtype == x.dtype

    # Pure-JAX reference of the same forward pass (high-precision dots).
    h_ref = jnp.maximum(
        jnp.dot(x, model.w1, precision="highest") + model.b1, 0.0)
    logits_ref = jnp.dot(h_ref, model.w2.T, precision="highest") + model.b2
    ref = 1.0 / (1.0 + jnp.exp(-logits_ref))

    # Tolerance accounts for the EUP approximate reciprocal in the sigmoid.
    assert bool(jnp.allclose(y, ref, atol=2e-3, rtol=2e-3))
    assert bool(jnp.all((y >= -1e-3) & (y <= 1.0 + 1e-3)))

    print("KERNEL_OK")
</pallas_src>

<mosaic_0001>
module attributes {stable_mosaic.version = 11 : i64} {
  func.func @_fcnn_fused_kernel(%arg0: i32, %arg1: i32, %arg2: memref<8x16xf32, #tpu.memory_space<vmem>>, %arg3: memref<16x32xf32, #tpu.memory_space<vmem>>, %arg4: memref<1x32xf32, #tpu.memory_space<vmem>>, %arg5: memref<1x32xf32, #tpu.memory_space<vmem>>, %arg6: memref<1x1xf32, #tpu.memory_space<vmem>>, %arg7: memref<1x8xf32, #tpu.memory_space<vmem>>, %arg8: memref<8x32xf32, #tpu.memory_space<vmem>>) attributes {dimension_semantics = [#tpu.dimension_semantics<parallel>, #tpu.dimension_semantics<arbitrary>], iteration_bounds = array<i64: 1, 1>, scalar_prefetch = 0 : i64, scratch_operands = 1 : i64, tpu.core_type = #tpu.core_type<tc>, window_params = [{transform_indices = @transform_0, window_bounds = array<i64: 8, 16>}, {transform_indices = @transform_1, window_bounds = array<i64: 16, 32>}, {pipeline_mode = #tpu.pipeline_mode<synchronous>, transform_indices = @transform_2, window_bounds = array<i64: 1, 32>}, {pipeline_mode = #tpu.pipeline_mode<synchronous>, transform_indices = @transform_3, window_bounds = array<i64: 1, 32>}, {pipeline_mode = #tpu.pipeline_mode<synchronous>, transform_indices = @transform_4, window_bounds = array<i64: 1, 1>}, {transform_indices = @transform_5, window_bounds = array<i64: 1, 8>}]} {
    %c0_i32 = arith.constant 0 : i32
    %0 = arith.cmpi eq, %arg1, %c0_i32 : i32
    %1 = arith.extui %0 : i1 to i32
    %c0_i32_0 = arith.constant 0 : i32
    %2 = arith.cmpi ne, %1, %c0_i32_0 : i32
    scf.if %2 {
      %cst_10 = arith.constant 0.000000e+00 : f32
      %12 = vector.broadcast %cst_10 : f32 to vector<8x32xf32>
      %c0_11 = arith.constant 0 : index
      %c0_12 = arith.constant 0 : index
      %13 = vector.load %arg8[%c0_11, %c0_12] : memref<8x32xf32, #tpu.memory_space<vmem>>, vector<8x32xf32>
      tpu.vector_store %arg8[%c0_11, %c0_12], %12 {strides = array<i32>} : memref<8x32xf32, #tpu.memory_space<vmem>>, vector<8x32xf32>,
    } else {
    }
    %c0 = arith.constant 0 : index
    %c0_1 = arith.constant 0 : index
    %3 = vector.load %arg8[%c0, %c0_1] : memref<8x32xf32, #tpu.memory_space<vmem>>, vector<8x32xf32>
    %c0_2 = arith.constant 0 : index
    %c0_3 = arith.constant 0 : index
    %4 = vector.load %arg2[%c0_2, %c0_3] : memref<8x16xf32, #tpu.memory_space<vmem>>, vector<8x16xf32>
    %c0_4 = arith.constant 0 : index
    %c0_5 = arith.constant 0 : index
    %5 = vector.load %arg3[%c0_4, %c0_5] : memref<16x32xf32, #tpu.memory_space<vmem>>, vector<16x32xf32>
    %cst = arith.constant dense<0.000000e+00> : vector<8x32xf32>
    %6 = tpu.matmul %4, %5, %cst {dimension_numbers = #tpu.dot_dimension_numbers<[1], [0], [0], [1], [0, 0, 1, 1], [], []>} : vector<8x16xf32>, vector<16x32xf32>, vector<8x32xf32> -> vector<8x32xf32>
    %7 = arith.addf %3, %6 : vector<8x32xf32>
    %c0_6 = arith.constant 0 : index
    %c0_7 = arith.constant 0 : index
    %8 = vector.load %arg8[%c0_6, %c0_7] : memref<8x32xf32, #tpu.memory_space<vmem>>, vector<8x32xf32>
    tpu.vector_store %arg8[%c0_6, %c0_7], %7 {strides = array<i32>} : memref<8x32xf32, #tpu.memory_space<vmem>>, vector<8x32xf32>,
    %c0_i32_8 = arith.constant 0 : i32
    %9 = arith.cmpi eq, %arg1, %c0_i32_8 : i32
    %10 = arith.extui %9 : i1 to i32
    %c0_i32_9 = arith.constant 0 : i32
    %11 = arith.cmpi ne, %10, %c0_i32_9 : i32
    scf.if %11 {
      %c0_10 = arith.constant 0 : index
      %c0_11 = arith.constant 0 : index
      %12 = vector.load %arg8[%c0_10, %c0_11] : memref<8x32xf32, #tpu.memory_space<vmem>>, vector<8x32xf32>
      %c0_12 = arith.constant 0 : index
      %c0_13 = arith.constant 0 : index
      %13 = vector.load %arg4[%c0_12, %c0_13] : memref<1x32xf32, #tpu.memory_space<vmem>>, vector<1x32xf32>
      %14 = vector.broadcast %13 : vector<1x32xf32> to vector<8x32xf32>
      %15 = arith.addf %12, %14 : vector<8x32xf32>
      %cst_14 = arith.constant 0.000000e+00 : f32
      %16 = vector.broadcast %cst_14 : f32 to vector<8x32xf32>
      %17 = arith.maximumf %15, %16 : vector<8x32xf32>
      %c0_15 = arith.constant 0 : index
      %c0_16 = arith.constant 0 : index
      %18 = vector.load %arg5[%c0_15, %c0_16] : memref<1x32xf32, #tpu.memory_space<vmem>>, vector<1x32xf32>
      %cst_17 = arith.constant dense<0.000000e+00> : vector<1x8xf32>
      %19 = tpu.matmul %18, %17, %cst_17 {dimension_numbers = #tpu.dot_dimension_numbers<[1], [1], [0], [0], [0, 0, 1, 0], [], []>} : vector<1x32xf32>, vector<8x32xf32>, vector<1x8xf32> -> vector<1x8xf32>
      %c0_18 = arith.constant 0 : index
      %c0_19 = arith.constant 0 : index
      %20 = vector.load %arg6[%c0_18, %c0_19] : memref<1x1xf32, #tpu.memory_space<vmem>>, vector<1x1xf32>
      %21 = vector.broadcast %20 : vector<1x1xf32> to vector<1x8xf32>
      %22 = arith.addf %19, %21 : vector<1x8xf32>
      %cst_20 = arith.constant 0.000000e+00 : f32
      %23 = vector.broadcast %cst_20 : f32 to vector<1x8xf32>
      %24 = arith.subf %23, %22 : vector<1x8xf32>
      %25 = math.exp %24 : vector<1x8xf32>
      %cst_21 = arith.constant 1.000000e+00 : f32
      %26 = vector.broadcast %cst_21 : f32 to vector<1x8xf32>
      %27 = arith.addf %26, %25 : vector<1x8xf32>
      %28 = tpu.reciprocal %27 {approx = true} : vector<1x8xf32> -> vector<1x8xf32>
      %c0_22 = arith.constant 0 : index
      %c0_23 = arith.constant 0 : index
      %29 = vector.load %arg7[%c0_22, %c0_23] : memref<1x8xf32, #tpu.memory_space<vmem>>, vector<1x8xf32>
      tpu.vector_store %arg7[%c0_22, %c0_23], %28 {strides = array<i32>} : memref<1x8xf32, #tpu.memory_space<vmem>>, vector<1x8xf32>,
    } else {
    }
    return
  }
  func.func @transform_0(%arg0: i32, %arg1: i32) -> (i32, i32) {
    %c0_i32 = arith.constant 0 : i32
    return %arg0, %arg1 : i32, i32
  }
  func.func @transform_1(%arg0: i32, %arg1: i32) -> (i32, i32) {
    %c0_i32 = arith.constant 0 : i32
    %c0_i32_0 = arith.constant 0 : i32
    return %arg1, %c0_i32 : i32, i32
  }
  func.func @transform_2(%arg0: i32, %arg1: i32) -> (i32, i32) {
    %c0_i32 = arith.constant 0 : i32
    %c0_i32_0 = arith.constant 0 : i32
    %c0_i32_1 = arith.constant 0 : i32
    return %c0_i32, %c0_i32_0 : i32, i32
  }
  func.func @transform_3(%arg0: i32, %arg1: i32) -> (i32, i32) {
    %c0_i32 = arith.constant 0 : i32
    %c0_i32_0 = arith.constant 0 : i32
    %c0_i32_1 = arith.constant 0 : i32
    return %c0_i32, %c0_i32_0 : i32, i32
  }
  func.func @transform_4(%arg0: i32, %arg1: i32) -> (i32, i32) {
    %c0_i32 = arith.constant 0 : i32
    %c0_i32_0 = arith.constant 0 : i32
    %c0_i32_1 = arith.constant 0 : i32
    return %c0_i32, %c0_i32_0 : i32, i32
  }
  func.func @transform_5(%arg0: i32, %arg1: i32) -> (i32, i32) {
    %c0_i32 = arith.constant 0 : i32
    %c0_i32_0 = arith.constant 0 : i32
    return %arg0, %c0_i32 : i32, i32
  }
}

</mosaic_0001>

<llo_original>
// kernel: tpu_custom_call.1
$region0: #{tpu_custom_call.1}
  #allocation0 [shape = 'u32[]', space=smem, size = 0x4, offset = 0x4, fixed_abs, tag = 'smem constant byte address 0x4 - core index']
  #allocation1 [shape = 'u32[144,128]{1,0:T(1,128)}', space=vmem, size = 0x12000, scoped, tag = 'internal scratch']
  #allocation2 [shape = 'f32[8,32]{1,0:T(8,128)}', space=vmem, size = 0x1000, scoped, tag = 'scratch operand']
  #allocation3 [shape = 'f32[1,1]{1,0:T(1,128)S(1)}', space=vmem, size = 0x200, scoped, tag = 'scoped memory for tpu_custom_call.1']
  %s0 = inlined_call_operand.hbm [shape: f32[8,16], index: 0, kind: input, shape index: {}]
  %s1 = inlined_call_operand.hbm [shape: f32[16,32], index: 1, kind: input, shape index: {}]
  %s2 = inlined_call_operand.vmem [shape: f32[1,32], index: 2, kind: input, shape index: {}]
  %s3 = inlined_call_operand.vmem [shape: f32[1,32], index: 3, kind: input, shape index: {}]
  %s4 = inlined_call_operand.<no memory space> [shape: f32[1,1], index: 4, kind: input, shape index: {}]
  %s5 = inlined_call_operand.hbm [shape: f32[1,8], index: 5, kind: output, shape index: {}]
  %s6 = sld [smem:[#allocation0]]
  $region46: #{tpu_custom_call.1} parent=0
    _
  %s8 = ssub.s32 1, %s6
  %s9 = scalar_select 0, %s8, %s6
  %v10 = vstv %s4
  %11 = vst [vmem:[#allocation3] sm:$0x1] %v10
  $region1: #{tpu_custom_call.1} parent=0
    #allocation4 [shape = 'u8[4096]{0}', space=vmem, size = 0x1000, scoped, tag = 'input window, operand 0, single buffered']
    #allocation5 [shape = 's32[1]{0}', space=sflag, size = 0x4, scoped, tag = 'scoped memory for tpu_custom_call.1']
    #allocation6 [shape = 's32[1]{0}', space=sflag, size = 0x4, scoped, tag = 'scoped memory for tpu_custom_call.1']
    #allocation7 [shape = 'u8[8192]{0}', space=vmem, size = 0x2000, scoped, tag = 'input window, operand 1, single buffered']
    #allocation8 [shape = 's32[1]{0}', space=sflag, size = 0x4, scoped, tag = 'scoped memory for tpu_custom_call.1']
    #allocation9 [shape = 'u8[512]{0}', space=vmem, size = 0x400, scoped, tag = 'output window, operand 0, single buffered']
    %12 = vsyncpa [#allocation5], 0
    %13 = vsyncpa [#allocation8], 0
    %14 = vsyncpa [#allocation6], 0
    // Predicated region
    $region2: #{tpu_custom_call.1} parent=1 // pred_check
      _
    $region3: #{tpu_custom_call.1} parent=1 // pred_check_branch
      %16 = sbr.rel (0) target = $region5
    $region4: #{tpu_custom_call.1} parent=1 // pred_region
      %s18 = ssub.s32 128, 128
      %19 = vsyncadd [#allocation5], %s18
      %s21 = sshll.u32 [#allocation4], 4
      %s22 = int_to_ptr.vmem [resolvable:$true] %s21
      %24 = dma.hbm_to_vmem [thread:$0]  %s0, 128, %s22, [#allocation5]
    $region5: #{tpu_custom_call.1} parent=1 // pred_fallthru
      _
    // Predicated region
    $region6: #{tpu_custom_call.1} parent=1 // pred_check
      _
    $region7: #{tpu_custom_call.1} parent=1 // pred_check_branch
      %26 = sbr.rel (0) target = $region9
    $region8: #{tpu_custom_call.1} parent=1 // pred_region
      %s28 = ssub.s32 256, 256
      %29 = vsyncadd [#allocation8], %s28
      %s30 = sshll.u32 [#allocation7], 4
      %s31 = int_to_ptr.vmem [resolvable:$true] %s30
      %36 = dma.hbm_to_vmem [thread:$0]  %s1, 256, %s31, [#allocation8], 128, 128, 8
    $region9: #{tpu_custom_call.1} parent=1 // pred_fallthru
      _
    // Predicated region
    $region10: #{tpu_custom_call.1} parent=1 // pred_check
      _
    $region11: #{tpu_custom_call.1} parent=1 // pred_check_branch
      %38 = sbr.rel (0) target = $region13
    $region12: #{tpu_custom_call.1} parent=1 // pred_region
      _
    $region13: #{tpu_custom_call.1} parent=1 // pred_fallthru
      _
    // Predicated region
    $region14: #{tpu_custom_call.1} parent=1 // pred_check
      _
    $region15: #{tpu_custom_call.1} parent=1 // pred_check_branch
      %40 = sbr.rel (0) target = $region17
    $region16: #{tpu_custom_call.1} parent=1 // pred_region
      _
    $region17: #{tpu_custom_call.1} parent=1 // pred_fallthru
      _
    // Predicated region
    $region18: #{tpu_custom_call.1} parent=1 // pred_check
      _
    $region19: #{tpu_custom_call.1} parent=1 // pred_check_branch
      %42 = sbr.rel (0) target = $region21
    $region20: #{tpu_custom_call.1} parent=1 // pred_region
      _
    $region21: #{tpu_custom_call.1} parent=1 // pred_fallthru
      _
    // Predicated region
    $region22: #{tpu_custom_call.1} parent=1 // pred_check
      _
    $region23: #{tpu_custom_call.1} parent=1 // pred_check_branch
      %44 = sbr.rel (0) target = $region25
    $region24: #{tpu_custom_call.1} parent=1 // pred_region
      %45 = dma.done [#allocation5], 128
    $region25: #{tpu_custom_call.1} parent=1 // pred_fallthru
      _
    // Predicated region
    $region26: #{tpu_custom_call.1} parent=1 // pred_check
      _
    $region27: #{tpu_custom_call.1} parent=1 // pred_check_branch
      %47 = sbr.rel (0) target = $region29
    $region28: #{tpu_custom_call.1} parent=1 // pred_region
      %48 = dma.done [#allocation8], 256
    $region29: #{tpu_custom_call.1} parent=1 // pred_fallthru
      _
    %p49 = scmp.eq.s32.totalorder 0, 0
    // Predicated region
    $region30: #{tpu_custom_call.1} parent=1 // pred_check
      %p50 = pneg %p49
    $region31: #{tpu_custom_call.1} parent=1 // pred_check_branch
      %52 = sbr.rel (%p50) target = $region33
    $region32: #{tpu_custom_call.1} parent=1 // pred_region
      %vm53 = vcmask 261120
      %54 = vst.msk [vmem:[#allocation2] sm:$0xff] %vm53, 0.0
    $region33: #{tpu_custom_call.1} parent=1 // pred_fallthru
      _
    %v55 = vld [vmem:[#allocation2] sm:$0xff]
    %v56 = vld [vmem:[#allocation4] sm:$0xff]
    %v57 = vld [vmem:[#allocation7] sm:$0xff]
    %v58 = vld [vmem:[#allocation7 + $0x8] sm:$0xff]
    %vm59 = vcmask 130048
    %v61 = vsel %vm59, %v56, 0
    %63 = vmatprep.subr.mxu0 0.0
    %64 = vmatpush1.msra.mxu0 %v57
    %65 = vmatprep.subr.mxu0 0.0
    %66 = vmatpush1.msra.mxu0 %v58
    %67 = vmatprep.subr.mxu0 0.0
    %68 = vmatpush1.msra.mxu0 0.0
    %69 = vmatprep.subr.mxu0 0.0
    %70 = vmatpush1.msra.mxu0 0.0
    %71 = vmatprep.subr.mxu0 0.0
    %72 = vmatpush1.msra.mxu0 0.0
    %73 = vmatprep.subr.mxu0 0.0
    %74 = vmatpush1.msra.mxu0 0.0
    %75 = vmatprep.subr.mxu0 0.0
    %76 = vmatpush1.msra.mxu0 0.0
    %77 = vmatprep.subr.mxu0 0.0
    %78 = vmatpush1.msra.mxu0 0.0
    %79 = vmatprep.subr.mxu0 0.0
    %80 = vmatpush1.msra.mxu0 0.0
    %81 = vmatprep.subr.mxu0 0.0
    %82 = vmatpush1.msra.mxu0 0.0
    %83 = vmatprep.subr.mxu0 0.0
    %84 = vmatpush1.msra.mxu0 0.0
    %85 = vmatprep.subr.mxu0 0.0
    %86 = vmatpush1.msra.mxu0 0.0
    %87 = vmatprep.subr.mxu0 0.0
    %88 = vmatpush1.msra.mxu0 0.0
    %89 = vmatprep.subr.mxu0 0.0
    %90 = vmatpush1.msra.mxu0 0.0
    %91 = vmatprep.subr.mxu0 0.0
    %92 = vmatpush1.msra.mxu0 0.0
    %93 = vmatprep.subr.mxu0 0.0
    %94 = vmatpush1.msra.mxu0 0.0
    %95 = vmatprep.subr.mxu0 0.0
    %96 = vmatpush1.msra.mxu0 0.0
    %97 = vmatprep.subr.mxu0 0.0
    %98 = vmatpush1.msra.mxu0 0.0
    %99 = vmatprep.subr.mxu0 0.0
    %100 = vmatpush1.msra.mxu0 0.0
    %101 = vmatprep.subr.mxu0 0.0
    %102 = vmatpush1.msra.mxu0 0.0
    %103 = vmatprep.subr.mxu0 0.0
    %104 = vmatpush1.msra.mxu0 0.0
    %105 = vmatprep.subr.mxu0 0.0
    %106 = vmatpush1.msra.mxu0 0.0
    %107 = vmatprep.subr.mxu0 0.0
    %108 = vmatpush1.msra.mxu0 0.0
    %109 = vmatprep.subr.mxu0 0.0
    %110 = vmatpush1.msra.mxu0 0.0
    %111 = vmatprep.subr.mxu0 0.0
    %112 = vmatpush1.msra.mxu0 0.0
    %113 = vmatprep.subr.mxu0 0.0
    %114 = vmatpush1.msra.mxu0 0.0
    %115 = vmatprep.subr.mxu0 0.0
    %116 = vmatpush1.msra.mxu0 0.0
    %117 = vmatprep.subr.mxu0 0.0
    %118 = vmatpush1.msra.mxu0 0.0
    %119 = vmatprep.subr.mxu0 0.0
    %120 = vmatpush1.msra.mxu0 0.0
    %121 = vmatprep.subr.mxu0 0.0
    %122 = vmatpush1.msra.mxu0 0.0
    %123 = vmatprep.subr.mxu0 0.0
    %124 = vmatpush1.msra.mxu0 0.0
    %125 = vmatprep.subr.mxu0 0.0
    %126 = vmatpush1.msra.mxu0 0.0
    %127 = vmatprep.mubr.f32.mxu0 0.0
    %128 = vmatmul.mubr.f32.gmra.mrb[0].mxu0 %v61
    %v129 = vpop.f32.mrb[0].mxu0
    %v130 = vadd.f32 0.0, %v129
    %v131 = vpop.f32.mrb[0].mxu0
    %132 = vdwg.mxu0
    %v133 = vadd.f32 %v55, %v130
    %vm134 = vcmask 261120
    %135 = vst.msk [vmem:[#allocation2] sm:$0xff] %vm134, %v133
    // Predicated region
    $region34: #{tpu_custom_call.1} parent=1 // pred_check
      %p136 = pneg %p49
    $region35: #{tpu_custom_call.1} parent=1 // pred_check_branch
      %138 = sbr.rel (%p136) target = $region37
    $region36: #{tpu_custom_call.1} parent=1 // pred_region
      %v139 = vld [vmem:[#allocation2] sm:$0xff]
      %v140 = vld [vmem:[%s2] sm:$0x1]
      %v142 = vlaneseq
      %v143 = vshrl.u32 %v142, 7
      %v144 = vsub.s32 0, %v143
      %v145 = vrot.slane %v140, %v144
      %v147 = vadd.f32 %v139, %v145
      %v148 = vmax.f32 %v147, 0.0
      %v149 = vld [vmem:[%s3] sm:$0x1]
      %v150 = vld [vmem:[#allocation3] sm:$0x1]
      %152 = vset.pattern.permute.xlu0 0
      %153 = vperm.xlu0 %152, %v150
      %v154 = vpop.permute.xlu0 %153
      %v156 = vlaneseq
      %v157 = vshrl.u32 %v156, 7
      %v158 = vsub.s32 0, %v157
      %v159 = vrot.slane %v154, %v158
      %v161 = vsel %vm134, %v149, 0
      %v164 = vsel %vm134, %v148, 0
      %166 = vmatprep.subr.mxu0 0.0
      %167 = vmatpush1.xpose.msra.mxu0 %v164
      %168 = vmatprep.subr.mxu0 0.0
      %169 = vmatpush1.xpose.msra.mxu0 0.0
      %170 = vmatprep.subr.mxu0 0.0
      %171 = vmatpush1.xpose.msra.mxu0 0.0
      %172 = vmatprep.subr.mxu0 0.0
      %173 = vmatpush1.xpose.msra.mxu0 0.0
      %174 = vmatprep.subr.mxu0 0.0
      %175 = vmatpush1.xpose.msra.mxu0 0.0
      %176 = vmatprep.subr.mxu0 0.0
      %177 = vmatpush1.xpose.msra.mxu0 0.0
      %178 = vmatprep.subr.mxu0 0.0
      %179 = vmatpush1.xpose.msra.mxu0 0.0
      %180 = vmatprep.subr.mxu0 0.0
      %181 = vmatpush1.xpose.msra.mxu0 0.0
      %182 = vmatprep.subr.mxu0 0.0
      %183 = vmatpush1.xpose.msra.mxu0 0.0
      %184 = vmatprep.subr.mxu0 0.0
      %185 = vmatpush1.xpose.msra.mxu0 0.0
      %186 = vmatprep.subr.mxu0 0.0
      %187 = vmatpush1.xpose.msra.mxu0 0.0
      %188 = vmatprep.subr.mxu0 0.0
      %189 = vmatpush1.xpose.msra.mxu0 0.0
      %190 = vmatprep.subr.mxu0 0.0
      %191 = vmatpush1.xpose.msra.mxu0 0.0
      %192 = vmatprep.subr.mxu0 0.0
      %193 = vmatpush1.xpose.msra.mxu0 0.0
      %194 = vmatprep.subr.mxu0 0.0
      %195 = vmatpush1.xpose.msra.mxu0 0.0
      %196 = vmatprep.subr.mxu0 0.0
      %197 = vmatpush1.xpose.msra.mxu0 0.0
      %198 = vmatprep.subr.mxu0 0.0
      %199 = vmatpush1.xpose.msra.mxu0 0.0
      %200 = vmatprep.subr.mxu0 0.0
      %201 = vmatpush1.xpose.msra.mxu0 0.0
      %202 = vmatprep.subr.mxu0 0.0
      %203 = vmatpush1.xpose.msra.mxu0 0.0
      %204 = vmatprep.subr.mxu0 0.0
      %205 = vmatpush1.xpose.msra.mxu0 0.0
      %206 = vmatprep.subr.mxu0 0.0
      %207 = vmatpush1.xpose.msra.mxu0 0.0
      %208 = vmatprep.subr.mxu0 0.0
      %209 = vmatpush1.xpose.msra.mxu0 0.0
      %210 = vmatprep.subr.mxu0 0.0
      %211 = vmatpush1.xpose.msra.mxu0 0.0
      %212 = vmatprep.subr.mxu0 0.0
      %213 = vmatpush1.xpose.msra.mxu0 0.0
      %214 = vmatprep.subr.mxu0 0.0
      %215 = vmatpush1.xpose.msra.mxu0 0.0
      %216 = vmatprep.subr.mxu0 0.0
      %217 = vmatpush1.xpose.msra.mxu0 0.0
      %218 = vmatprep.subr.mxu0 0.0
      %219 = vmatpush1.xpose.msra.mxu0 0.0
      %220 = vmatprep.subr.mxu0 0.0
      %221 = vmatpush1.xpose.msra.mxu0 0.0
      %222 = vmatprep.subr.mxu0 0.0
      %223 = vmatpush1.xpose.msra.mxu0 0.0
      %224 = vmatprep.subr.mxu0 0.0
      %225 = vmatpush1.xpose.msra.mxu0 0.0
      %226 = vmatprep.subr.mxu0 0.0
      %227 = vmatpush1.xpose.msra.mxu0 0.0
      %228 = vmatprep.subr.mxu0 0.0
      %229 = vmatpush1.xpose.msra.mxu0 0.0
      %230 = vmatprep.mubr.f32.mxu0 0.0
      %231 = vmatmul.mubr.f32.gmra.mrb[0].mxu0 %v161
      %v232 = vpop.f32.mrb[0].mxu0
      %v233 = vadd.f32 %v159, %v232
      %v234 = vpop.f32.mrb[0].mxu0
      %235 = vdwg.mxu0
      %v236 = vsub.f32 0.0, %v233
      %v237 = vmul.f32 %v236, 1.442695
      %v238 = vpow.pop %v237
      %v239 = vadd.f32 %v238, 1.0
      %v240 = vrcp.pop %v239
      %vm241 = vcmask 57344
      %242 = vst.msk [vmem:[#allocation9] sm:$0x1] %vm241, %v240
    $region37: #{tpu_custom_call.1} parent=1 // pred_fallthru
      _
    // Predicated region
    $region38: #{tpu_custom_call.1} parent=1 // pred_check
      _
    $region39: #{tpu_custom_call.1} parent=1 // pred_check_branch
      %244 = sbr.rel (0) target = $region41
    $region40: #{tpu_custom_call.1} parent=1 // pred_region
      %s246 = ssub.s32 16, 16
      %247 = vsyncadd [#allocation6], %s246
      %s249 = sshll.u32 [#allocation9], 4
      %s250 = int_to_ptr.vmem [resolvable:$true] %s249
      %252 = dma.vmem_to_hbm [thread:$0]  %s250, 16, %s5, [#allocation6]
    $region41: #{tpu_custom_call.1} parent=1 // pred_fallthru
      _
    // Predicated region
    $region42: #{tpu_custom_call.1} parent=1 // pred_check
      _
    $region43: #{tpu_custom_call.1} parent=1 // pred_check_branch
      %254 = sbr.rel (0) target = $region45
    $region44: #{tpu_custom_call.1} parent=1 // pred_region
      %255 = dma.done [#allocation6], 16
    $region45: #{tpu_custom_call.1} parent=1 // pred_fallthru
      _
    %256 = vsyncpa [#allocation5], 1
    %257 = vsyncpa [#allocation8], 1
    %258 = vsyncpa [#allocation6], 1

</llo_original>
